<compile_context>
chip_gen: v7x
topology: tpu7x:2x2x1
jax: 0.10.0
libtpu: 0.0.40
codegen_flags: <defaults>
</compile_context>

<pallas_src>
import jax
import jax.numpy as jnp
from jax.experimental import pallas as pl
from jax.experimental.pallas import tpu as pltpu


# Batch sizes up to this use the gridless single-block path.
# Whole-problem VMEM footprint (lane-padded) ~= B * 1 KiB -> 16 MiB at 16384.
_SMALL_B_MAX = 16384

# Batch tile (rows) for the streaming path. Double-buffered, lane-padded
# footprint ~= 2 * TILE_B * 1 KiB = 16 MiB — inside the 32 MiB scoped limit
# on every generation (v5e/v6e/v7x).
_TILE_B = 8192

_VMEM_LIMIT_BYTES = 32 * 1024 * 1024


def _agent_net_kernel(x_ref, w_ref, o_ref):
    # x_ref: (TB, 1) f32   — batch rows on sublanes, native PyTorch layout
    # w_ref: (1, O)  f32   — Linear(1, O) weight as a single row
    # o_ref: (TB, O) f32   — output block, same layout as the PyTorch result
    # Broadcast outer product (TB,1)*(1,O) on the VPU + sigmoid on the EUP.
    o_ref[...] = jax.nn.sigmoid(x_ref[...] * w_ref[...])


def _cost(B, O):
    # ~1 mul + 1 transcendental per output element; bytes: read x + w, write out.
    return pl.CostEstimate(
        flops=B * O,
        transcendentals=B * O,
        bytes_accessed=4 * (B + O + B * O),
    )


def agent_net_forward(x, weight):
    """x: (B, 1) float32, weight: (out_features, 1) float32 (PyTorch layout).

    Returns sigmoid(x @ weight.T) with shape (B, out_features).
    """
    B, K = x.shape
    assert K == 1, "agent_net layer6 is Linear(1, out_features)"
    O, Kw = weight.shape
    assert Kw == 1

    # Only relayout kept: (O,1)->(1,O) on a 20-byte weight. Negligible.
    w_row = weight.reshape(1, O)

    if B <= _SMALL_B_MAX:
        # Gridless path: operands fully resident in VMEM, single invocation,
        # no grid-loop machinery, no reshape/transpose around the call.
        return pl.pallas_call(
            _agent_net_kernel,
            out_shape=jax.ShapeDtypeStruct((B, O), jnp.float32),
            in_specs=[
                pl.BlockSpec(memory_space=pltpu.MemorySpace.VMEM),  # x (B, 1)
                pl.BlockSpec(memory_space=pltpu.MemorySpace.VMEM),  # w (1, O)
            ],
            out_specs=pl.BlockSpec(memory_space=pltpu.MemorySpace.VMEM),
            compiler_params=pltpu.CompilerParams(
                vmem_limit_bytes=_VMEM_LIMIT_BYTES
            ),
            cost_estimate=_cost(B, O),
        )(x, w_row)

    # Streaming path: tile the batch (row) axis over the UNPADDED array;
    # Pallas masks the ragged last block, so no wrapper pad/slice passes.
    n_tiles = pl.cdiv(B, _TILE_B)
    return pl.pallas_call(
        _agent_net_kernel,
        out_shape=jax.ShapeDtypeStruct((B, O), jnp.float32),
        grid=(n_tiles,),
        in_specs=[
            pl.BlockSpec((_TILE_B, 1), lambda i: (i, 0)),          # x tile
            pl.BlockSpec(memory_space=pltpu.MemorySpace.VMEM),     # w resident
        ],
        out_specs=pl.BlockSpec((_TILE_B, O), lambda i: (i, 0)),
        compiler_params=pltpu.CompilerParams(
            dimension_semantics=("parallel",),   # v7x: split tiles across 2 TCs
            vmem_limit_bytes=_VMEM_LIMIT_BYTES,
        ),
        cost_estimate=_cost(B, O),
    )(x, w_row)


if __name__ == "__main__":
    key = jax.random.PRNGKey(0)
    k_x, k_w, k_xb = jax.random.split(key, 3)

    batch = 8
    in_features = 1
    out_features = 5

    # Deterministic synthetic input + weight (PyTorch Linear weight shape: (out, in)).
    x = jax.random.normal(k_x, (batch, in_features), dtype=jnp.float32)
    # fan_in = 1 so kaiming-uniform range is U(-1, 1).
    weight = jax.random.uniform(
        k_w, (out_features, in_features), dtype=jnp.float32, minval=-1.0, maxval=1.0
    )

    # Small-batch (gridless) path.
    out = agent_net_forward(x, weight)
    jax.block_until_ready(out)
    ref = jax.nn.sigmoid(x @ weight.T)
    assert out.shape == (batch, out_features)
    assert jnp.allclose(out, ref, atol=1e-6), "small-batch mismatch vs reference"

    # Streaming (tiled) path with a ragged tail: 20000 = 2*8192 + 3616,
    # exercising the masked partial last block (no pad/slice in the wrapper).
    big_b = 20000
    xb = jax.random.normal(k_xb, (big_b, in_features), dtype=jnp.float32)
    outb = agent_net_forward(xb, weight)
    jax.block_until_ready(outb)
    refb = jax.nn.sigmoid(xb @ weight.T)
    assert outb.shape == (big_b, out_features)
    assert jnp.allclose(outb, refb, atol=1e-6), "tiled-path mismatch vs reference"

    print("KERNEL_OK")
</pallas_src>

<mosaic_0001>
module attributes {stable_mosaic.version = 11 : i64} {
  func.func @_agent_net_kernel(%arg0: memref<8x1xf32, #tpu.memory_space<vmem>>, %arg1: memref<1x5xf32, #tpu.memory_space<vmem>>, %arg2: memref<8x5xf32, #tpu.memory_space<vmem>>) attributes {dimension_semantics = [], scalar_prefetch = 0 : i64, scratch_operands = 0 : i64, tpu.core_type = #tpu.core_type<tc>} {
    %c0 = arith.constant 0 : index
    %c0_0 = arith.constant 0 : index
    %0 = vector.load %arg0[%c0, %c0_0] : memref<8x1xf32, #tpu.memory_space<vmem>>, vector<8x1xf32>
    %c0_1 = arith.constant 0 : index
    %c0_2 = arith.constant 0 : index
    %1 = vector.load %arg1[%c0_1, %c0_2] : memref<1x5xf32, #tpu.memory_space<vmem>>, vector<1x5xf32>
    %2 = vector.broadcast %0 : vector<8x1xf32> to vector<8x5xf32>
    %3 = vector.broadcast %1 : vector<1x5xf32> to vector<8x5xf32>
    %4 = arith.mulf %2, %3 : vector<8x5xf32>
    %5 = arith.negf %4 : vector<8x5xf32>
    %6 = math.exp %5 : vector<8x5xf32>
    %cst = arith.constant 1.000000e+00 : f32
    %7 = vector.broadcast %cst : f32 to vector<8x5xf32>
    %8 = arith.addf %7, %6 : vector<8x5xf32>
    %9 = arith.divf %7, %8 : vector<8x5xf32>
    %c0_3 = arith.constant 0 : index
    %c0_4 = arith.constant 0 : index
    %10 = vector.load %arg2[%c0_3, %c0_4] : memref<8x5xf32, #tpu.memory_space<vmem>>, vector<8x5xf32>
    tpu.vector_store %arg2[%c0_3, %c0_4], %9 {strides = array<i32>} : memref<8x5xf32, #tpu.memory_space<vmem>>, vector<8x5xf32>,
    return
  }
}

</mosaic_0001>

<llo_original>
// kernel: tpu_custom_call.1
$region0: #{tpu_custom_call.1}
  #allocation0 [shape = 'u32[]', space=smem, size = 0x4, offset = 0x4, fixed_abs, tag = 'smem constant byte address 0x4 - core index']
  #allocation1 [shape = 'u32[144,128]{1,0:T(1,128)}', space=vmem, size = 0x12000, scoped, tag = 'internal scratch']
  %s0 = inlined_call_operand.vmem [shape: f32[8,1], index: 0, kind: input, shape index: {}]
  %s1 = inlined_call_operand.vmem [shape: f32[1,5], index: 1, kind: input, shape index: {}]
  %s2 = inlined_call_operand.hbm [shape: f32[8,5], index: 2, kind: output, shape index: {}]
  %s3 = sld [smem:[#allocation0]]
  $region18: #{tpu_custom_call.1} parent=0
    _
  %s5 = ssub.s32 1, %s3
  %s6 = scalar_select 0, %s5, %s3
  $region1: #{tpu_custom_call.1} parent=0
    #allocation2 [shape = 'u8[4096]{0}', space=vmem, size = 0x1000, scoped, tag = 'output window, operand 0, single buffered']
    #allocation3 [shape = 's32[1]{0}', space=sflag, size = 0x4, scoped, tag = 'scoped memory for tpu_custom_call.1']
    %7 = vsyncpa [#allocation3], 0
    // Predicated region
    $region2: #{tpu_custom_call.1} parent=1 // pred_check
      _
    $region3: #{tpu_custom_call.1} parent=1 // pred_check_branch
      %9 = sbr.rel (0) target = $region5
    $region4: #{tpu_custom_call.1} parent=1 // pred_region
      _
    $region5: #{tpu_custom_call.1} parent=1 // pred_fallthru
      _
    // Predicated region
    $region6: #{tpu_custom_call.1} parent=1 // pred_check
      _
    $region7: #{tpu_custom_call.1} parent=1 // pred_check_branch
      %11 = sbr.rel (0) target = $region9
    $region8: #{tpu_custom_call.1} parent=1 // pred_region
      _
    $region9: #{tpu_custom_call.1} parent=1 // pred_fallthru
      _
    %v12 = vld [vmem:[%s0] sm:$0xff]
    %v13 = vld [vmem:[%s1] sm:$0x1]
    %15 = vset.pattern.permute.xlu0 0
    %16 = vperm.xlu0 %15, %v12
    %v17 = vpop.permute.xlu0 %16
    %v20 = vlaneseq
    %v21 = vshrl.u32 %v20, 7
    %v22 = vsub.s32 0, %v21
    %v23 = vrot.slane %v13, %v22
    %v25 = vmul.f32 %v17, %v23
    %v26 = vxor.u32 %v25, 2147483648
    %v27 = vmul.f32 %v26, 1.442695
    %v28 = vpow.pop %v27
    %v29 = vadd.f32 %v28, 1.0
    %v30 = vrcp.pop %v29
    %v31 = vmul.f32 1.0, %v30
    %vm32 = vcmask 39936
    %33 = vst.msk [vmem:[#allocation2] sm:$0xff] %vm32, %v31
    // Predicated region
    $region10: #{tpu_custom_call.1} parent=1 // pred_check
      _
    $region11: #{tpu_custom_call.1} parent=1 // pred_check_branch
      %35 = sbr.rel (0) target = $region13
    $region12: #{tpu_custom_call.1} parent=1 // pred_region
      %s37 = ssub.s32 128, 128
      %38 = vsyncadd [#allocation3], %s37
      %s40 = sshll.u32 [#allocation2], 4
      %s41 = int_to_ptr.vmem [resolvable:$true] %s40
      %43 = dma.vmem_to_hbm [thread:$0]  %s41, 128, %s2, [#allocation3]
    $region13: #{tpu_custom_call.1} parent=1 // pred_fallthru
      _
    // Predicated region
    $region14: #{tpu_custom_call.1} parent=1 // pred_check
      _
    $region15: #{tpu_custom_call.1} parent=1 // pred_check_branch
      %45 = sbr.rel (0) target = $region17
    $region16: #{tpu_custom_call.1} parent=1 // pred_region
      %46 = dma.done [#allocation3], 128
    $region17: #{tpu_custom_call.1} parent=1 // pred_fallthru
      _
    %47 = vsyncpa [#allocation3], 1

</llo_original>
